<compile_context>
chip_gen: v5e
topology: v5e:2x2
jax: 0.10.0
libtpu: 0.0.40
codegen_flags: <defaults>
</compile_context>

<pallas_src>
import functools
import math

import jax
import jax.numpy as jnp
from jax.experimental import pallas as pl
from jax.experimental.pallas import tpu as pltpu


def _round_up(n, m):
    return ((n + m - 1) // m) * m


def qnet_kernel(x_ref, w1_ref, b1_ref, w2_ref, b2_ref, w3_ref, b3_ref,
                wq_ref, bq_ref, out_ref):
    """Fused 4-layer MLP forward for one batch tile, entirely in VMEM.

    Matmuls run on the MXU in the weights' dtype (f32 or bf16) with f32
    accumulation; bias-add / ReLU run in f32 on the VPU (v5e has no bf16 VPU).
    """
    wdt = w2_ref.dtype
    h = jnp.dot(x_ref[...], w1_ref[...],
                preferred_element_type=jnp.float32) + b1_ref[...]
    h = jnp.maximum(h, 0.0).astype(wdt)
    h = jnp.dot(h, w2_ref[...],
                preferred_element_type=jnp.float32) + b2_ref[...]
    h = jnp.maximum(h, 0.0).astype(wdt)
    h = jnp.dot(h, w3_ref[...],
                preferred_element_type=jnp.float32) + b3_ref[...]
    h = jnp.maximum(h, 0.0).astype(wdt)
    q = jnp.dot(h, wq_ref[...],
                preferred_element_type=jnp.float32) + bq_ref[...]
    out_ref[...] = q.astype(out_ref.dtype)


def prepare_qnet_params(params, compute_dtype=jnp.bfloat16):
    """One-time weight prep, hoisted out of the per-call path.

    Weights -> compute_dtype (MXU inputs); biases stay f32 as (1, N) rows.
    """
    w1, b1, w2, b2, w3, b3, wq, bq = params
    cd = compute_dtype
    return (w1.astype(cd), b1.reshape(1, -1).astype(jnp.float32),
            w2.astype(cd), b2.reshape(1, -1).astype(jnp.float32),
            w3.astype(cd), b3.reshape(1, -1).astype(jnp.float32),
            wq.astype(cd), bq.reshape(1, -1).astype(jnp.float32))


@functools.partial(jax.jit, static_argnames=("batch_tile", "min_grid"))
def qnet_forward(x, prepared_params, *, batch_tile=512, min_grid=1):
    """x: (B, obs+goal) float32. prepared_params from prepare_qnet_params().

    Returns (B, n_action) float32. Set min_grid=2 on v7x for large batches so
    both TensorCores get a grid step (harmless elsewhere).
    """
    w1, b1, w2, b2, w3, b3, wq, bq = prepared_params
    cd = w1.dtype
    B, D_in = x.shape
    H = w1.shape[1]                       # 256
    n_action = wq.shape[1]

    # Balanced, sublane-aligned batch tiling (no huge zero last tile).
    n_tiles = max(1, math.ceil(B / batch_tile))
    n_tiles = max(n_tiles, min(min_grid, math.ceil(B / 8)))
    bt = _round_up(math.ceil(B / n_tiles), 8)
    B_pad = n_tiles * bt

    # Only cast + row-pad x (no feature-dim padding).
    x_p = x.astype(cd)
    if B_pad > B:
        x_p = jnp.pad(x_p, ((0, B_pad - B), (0, 0)))

    # Honest scoped-VMEM budget: resident weights/biases, double-buffered
    # x/out tiles, f32 activation intermediates + bf16 casts, plus headroom.
    itemsize = jnp.dtype(cd).itemsize
    weight_bytes = (D_in * H + 2 * H * H + H * n_action) * itemsize
    bias_bytes = (3 * H + n_action) * 4
    io_bytes = 2 * (bt * D_in * itemsize + bt * n_action * 4)
    act_bytes = bt * H * (4 * 4 + 3 * itemsize)
    vmem_limit = int(weight_bytes + bias_bytes + io_bytes + act_bytes + (8 << 20))

    def resident(a):
        # Full-array block, constant index -> DMA'd once, stays in VMEM.
        return pl.BlockSpec(a.shape, lambda i: (0, 0))

    out = pl.pallas_call(
        qnet_kernel,
        out_shape=jax.ShapeDtypeStruct((B_pad, n_action), jnp.float32),
        grid=(n_tiles,),
        in_specs=[
            pl.BlockSpec((bt, D_in), lambda i: (i, 0)),   # x tile (natural width)
            resident(w1), resident(b1),
            resident(w2), resident(b2),
            resident(w3), resident(b3),
            resident(wq), resident(bq),
        ],
        out_specs=pl.BlockSpec((bt, n_action), lambda i: (i, 0)),
        compiler_params=pltpu.CompilerParams(
            dimension_semantics=("parallel",),
            vmem_limit_bytes=vmem_limit),
    )(x_p, w1, b1, w2, b2, w3, b3, wq, bq)

    return out[:B]


def init_qnet_params(key, obs, goal, n_action, hidden=256):
    """PyTorch-Linear-style init (uniform +-1/sqrt(fan_in)).

    Weights stored transposed as (in_features, out_features)."""
    dims = [(obs + goal, hidden), (hidden, hidden),
            (hidden, hidden), (hidden, n_action)]
    params = []
    for fan_in, fan_out in dims:
        key, kw, kb = jax.random.split(key, 3)
        bound = 1.0 / jnp.sqrt(fan_in)
        w = jax.random.uniform(kw, (fan_in, fan_out), jnp.float32, -bound, bound)
        b = jax.random.uniform(kb, (1, fan_out), jnp.float32, -bound, bound)
        params += [w, b]
    return tuple(params)


def qnet_reference(x, params):
    """Plain-JAX reference of the PyTorch forward."""
    w1, b1, w2, b2, w3, b3, wq, bq = params
    h = jnp.maximum(x @ w1 + b1, 0.0)
    h = jnp.maximum(h @ w2 + b2, 0.0)
    h = jnp.maximum(h @ w3 + b3, 0.0)
    return h @ wq + bq


if __name__ == "__main__":
    # env_params: obs=10, goal=3, n_action=4  (small synthetic sizes)
    obs, goal, n_action = 10, 3, 4

    key = jax.random.PRNGKey(0)
    key, kx = jax.random.split(key)
    params = init_qnet_params(key, obs, goal, n_action)

    params_f32 = prepare_qnet_params(params, jnp.float32)    # exact path
    params_bf16 = prepare_qnet_params(params, jnp.bfloat16)  # default fast path

    # 1) Small batch (single 8-row tile), f32 path -> tight check.
    x_small = jax.random.normal(kx, (2, obs + goal), jnp.float32)
    q = jax.block_until_ready(qnet_forward(x_small, params_f32))
    q_ref = qnet_reference(x_small, params)
    assert q.shape == (2, n_action)
    assert jnp.allclose(q, q_ref, atol=1e-5, rtol=1e-5), "f32 small-batch mismatch"

    # 2) Multi-tile grid with balanced tiles (300 -> 3 tiles of 104), f32 path.
    key, kx2 = jax.random.split(key)
    x_big = jax.random.normal(kx2, (300, obs + goal), jnp.float32)
    q_big = jax.block_until_ready(qnet_forward(x_big, params_f32, batch_tile=128))
    q_big_ref = qnet_reference(x_big, params)
    assert q_big.shape == (300, n_action)
    assert jnp.allclose(q_big, q_big_ref, atol=1e-5, rtol=1e-5), "f32 multi-tile mismatch"

    # 3) v7x-style 2-way grid split across TensorCores (harmless on v5e/v6e).
    q_split = jax.block_until_ready(qnet_forward(x_big, params_f32, min_grid=2))
    assert jnp.allclose(q_split, q_big_ref, atol=1e-5, rtol=1e-5), "min_grid=2 mismatch"

    # 4) Default bf16 MXU path (f32 accumulation) -> loose check.
    q_bf16 = jax.block_until_ready(qnet_forward(x_big, params_bf16))
    err = float(jnp.max(jnp.abs(q_bf16 - q_big_ref)))
    assert err < 0.1, f"bf16 path drifted too far: {err}"

    print("KERNEL_OK")
</pallas_src>

<mosaic_0001>
module attributes {stable_mosaic.version = 11 : i64} {
  func.func @qnet_kernel(%arg0: i32, %arg1: memref<8x13xf32, #tpu.memory_space<vmem>>, %arg2: memref<13x256xf32, #tpu.memory_space<vmem>>, %arg3: memref<1x256xf32, #tpu.memory_space<vmem>>, %arg4: memref<256x256xf32, #tpu.memory_space<vmem>>, %arg5: memref<1x256xf32, #tpu.memory_space<vmem>>, %arg6: memref<256x256xf32, #tpu.memory_space<vmem>>, %arg7: memref<1x256xf32, #tpu.memory_space<vmem>>, %arg8: memref<256x4xf32, #tpu.memory_space<vmem>>, %arg9: memref<1x4xf32, #tpu.memory_space<vmem>>, %arg10: memref<8x4xf32, #tpu.memory_space<vmem>>) attributes {dimension_semantics = [#tpu.dimension_semantics<parallel>], iteration_bounds = array<i64: 1>, scalar_prefetch = 0 : i64, scratch_operands = 0 : i64, tpu.core_type = #tpu.core_type<tc>, window_params = [{transform_indices = @transform_0, window_bounds = array<i64: 8, 13>}, {pipeline_mode = #tpu.pipeline_mode<synchronous>, transform_indices = @transform_1, window_bounds = array<i64: 13, 256>}, {pipeline_mode = #tpu.pipeline_mode<synchronous>, transform_indices = @transform_2, window_bounds = array<i64: 1, 256>}, {pipeline_mode = #tpu.pipeline_mode<synchronous>, transform_indices = @transform_3, window_bounds = array<i64: 256, 256>}, {pipeline_mode = #tpu.pipeline_mode<synchronous>, transform_indices = @transform_4, window_bounds = array<i64: 1, 256>}, {pipeline_mode = #tpu.pipeline_mode<synchronous>, transform_indices = @transform_5, window_bounds = array<i64: 256, 256>}, {pipeline_mode = #tpu.pipeline_mode<synchronous>, transform_indices = @transform_6, window_bounds = array<i64: 1, 256>}, {pipeline_mode = #tpu.pipeline_mode<synchronous>, transform_indices = @transform_7, window_bounds = array<i64: 256, 4>}, {pipeline_mode = #tpu.pipeline_mode<synchronous>, transform_indices = @transform_8, window_bounds = array<i64: 1, 4>}, {transform_indices = @transform_9, window_bounds = array<i64: 8, 4>}]} {
    %c0 = arith.constant 0 : index
    %c0_0 = arith.constant 0 : index
    %0 = vector.load %arg1[%c0, %c0_0] : memref<8x13xf32, #tpu.memory_space<vmem>>, vector<8x13xf32>
    %c0_1 = arith.constant 0 : index
    %c0_2 = arith.constant 0 : index
    %1 = vector.load %arg2[%c0_1, %c0_2] : memref<13x256xf32, #tpu.memory_space<vmem>>, vector<13x256xf32>
    %cst = arith.constant dense<0.000000e+00> : vector<8x256xf32>
    %2 = tpu.matmul %0, %1, %cst {dimension_numbers = #tpu.dot_dimension_numbers<[1], [0], [0], [1], [0, 0, 1, 1], [], []>} : vector<8x13xf32>, vector<13x256xf32>, vector<8x256xf32> -> vector<8x256xf32>
    %c0_3 = arith.constant 0 : index
    %c0_4 = arith.constant 0 : index
    %3 = vector.load %arg3[%c0_3, %c0_4] : memref<1x256xf32, #tpu.memory_space<vmem>>, vector<1x256xf32>
    %4 = vector.broadcast %3 : vector<1x256xf32> to vector<8x256xf32>
    %5 = arith.addf %2, %4 : vector<8x256xf32>
    %cst_5 = arith.constant 0.000000e+00 : f32
    %6 = vector.broadcast %cst_5 : f32 to vector<8x256xf32>
    %7 = arith.maximumf %5, %6 : vector<8x256xf32>
    %c0_6 = arith.constant 0 : index
    %c0_7 = arith.constant 0 : index
    %8 = vector.load %arg4[%c0_6, %c0_7] : memref<256x256xf32, #tpu.memory_space<vmem>>, vector<256x256xf32>
    %cst_8 = arith.constant dense<0.000000e+00> : vector<8x256xf32>
    %9 = tpu.matmul %7, %8, %cst_8 {dimension_numbers = #tpu.dot_dimension_numbers<[1], [0], [0], [1], [0, 0, 1, 1], [], []>} : vector<8x256xf32>, vector<256x256xf32>, vector<8x256xf32> -> vector<8x256xf32>
    %c0_9 = arith.constant 0 : index
    %c0_10 = arith.constant 0 : index
    %10 = vector.load %arg5[%c0_9, %c0_10] : memref<1x256xf32, #tpu.memory_space<vmem>>, vector<1x256xf32>
    %11 = vector.broadcast %10 : vector<1x256xf32> to vector<8x256xf32>
    %12 = arith.addf %9, %11 : vector<8x256xf32>
    %cst_11 = arith.constant 0.000000e+00 : f32
    %13 = vector.broadcast %cst_11 : f32 to vector<8x256xf32>
    %14 = arith.maximumf %12, %13 : vector<8x256xf32>
    %c0_12 = arith.constant 0 : index
    %c0_13 = arith.constant 0 : index
    %15 = vector.load %arg6[%c0_12, %c0_13] : memref<256x256xf32, #tpu.memory_space<vmem>>, vector<256x256xf32>
    %cst_14 = arith.constant dense<0.000000e+00> : vector<8x256xf32>
    %16 = tpu.matmul %14, %15, %cst_14 {dimension_numbers = #tpu.dot_dimension_numbers<[1], [0], [0], [1], [0, 0, 1, 1], [], []>} : vector<8x256xf32>, vector<256x256xf32>, vector<8x256xf32> -> vector<8x256xf32>
    %c0_15 = arith.constant 0 : index
    %c0_16 = arith.constant 0 : index
    %17 = vector.load %arg7[%c0_15, %c0_16] : memref<1x256xf32, #tpu.memory_space<vmem>>, vector<1x256xf32>
    %18 = vector.broadcast %17 : vector<1x256xf32> to vector<8x256xf32>
    %19 = arith.addf %16, %18 : vector<8x256xf32>
    %cst_17 = arith.constant 0.000000e+00 : f32
    %20 = vector.broadcast %cst_17 : f32 to vector<8x256xf32>
    %21 = arith.maximumf %19, %20 : vector<8x256xf32>
    %c0_18 = arith.constant 0 : index
    %c0_19 = arith.constant 0 : index
    %22 = vector.load %arg8[%c0_18, %c0_19] : memref<256x4xf32, #tpu.memory_space<vmem>>, vector<256x4xf32>
    %cst_20 = arith.constant dense<0.000000e+00> : vector<8x4xf32>
    %23 = tpu.matmul %21, %22, %cst_20 {dimension_numbers = #tpu.dot_dimension_numbers<[1], [0], [0], [1], [0, 0, 1, 1], [], []>} : vector<8x256xf32>, vector<256x4xf32>, vector<8x4xf32> -> vector<8x4xf32>
    %c0_21 = arith.constant 0 : index
    %c0_22 = arith.constant 0 : index
    %24 = vector.load %arg9[%c0_21, %c0_22] : memref<1x4xf32, #tpu.memory_space<vmem>>, vector<1x4xf32>
    %25 = vector.broadcast %24 : vector<1x4xf32> to vector<8x4xf32>
    %26 = arith.addf %23, %25 : vector<8x4xf32>
    %c0_23 = arith.constant 0 : index
    %c0_24 = arith.constant 0 : index
    %27 = vector.load %arg10[%c0_23, %c0_24] : memref<8x4xf32, #tpu.memory_space<vmem>>, vector<8x4xf32>
    tpu.vector_store %arg10[%c0_23, %c0_24], %26 {strides = array<i32>} : memref<8x4xf32, #tpu.memory_space<vmem>>, vector<8x4xf32>,
    return
  }
  func.func @transform_0(%arg0: i32) -> (i32, i32) {
    %c0_i32 = arith.constant 0 : i32
    %c0_i32_0 = arith.constant 0 : i32
    return %arg0, %c0_i32 : i32, i32
  }
  func.func @transform_1(%arg0: i32) -> (i32, i32) {
    %c0_i32 = arith.constant 0 : i32
    %c0_i32_0 = arith.constant 0 : i32
    %c0_i32_1 = arith.constant 0 : i32
    return %c0_i32, %c0_i32_0 : i32, i32
  }
  func.func @transform_2(%arg0: i32) -> (i32, i32) {
    %c0_i32 = arith.constant 0 : i32
    %c0_i32_0 = arith.constant 0 : i32
    %c0_i32_1 = arith.constant 0 : i32
    return %c0_i32, %c0_i32_0 : i32, i32
  }
  func.func @transform_3(%arg0: i32) -> (i32, i32) {
    %c0_i32 = arith.constant 0 : i32
    %c0_i32_0 = arith.constant 0 : i32
    %c0_i32_1 = arith.constant 0 : i32
    return %c0_i32, %c0_i32_0 : i32, i32
  }
  func.func @transform_4(%arg0: i32) -> (i32, i32) {
    %c0_i32 = arith.constant 0 : i32
    %c0_i32_0 = arith.constant 0 : i32
    %c0_i32_1 = arith.constant 0 : i32
    return %c0_i32, %c0_i32_0 : i32, i32
  }
  func.func @transform_5(%arg0: i32) -> (i32, i32) {
    %c0_i32 = arith.constant 0 : i32
    %c0_i32_0 = arith.constant 0 : i32
    %c0_i32_1 = arith.constant 0 : i32
    return %c0_i32, %c0_i32_0 : i32, i32
  }
  func.func @transform_6(%arg0: i32) -> (i32, i32) {
    %c0_i32 = arith.constant 0 : i32
    %c0_i32_0 = arith.constant 0 : i32
    %c0_i32_1 = arith.constant 0 : i32
    return %c0_i32, %c0_i32_0 : i32, i32
  }
  func.func @transform_7(%arg0: i32) -> (i32, i32) {
    %c0_i32 = arith.constant 0 : i32
    %c0_i32_0 = arith.constant 0 : i32
    %c0_i32_1 = arith.constant 0 : i32
    return %c0_i32, %c0_i32_0 : i32, i32
  }
  func.func @transform_8(%arg0: i32) -> (i32, i32) {
    %c0_i32 = arith.constant 0 : i32
    %c0_i32_0 = arith.constant 0 : i32
    %c0_i32_1 = arith.constant 0 : i32
    return %c0_i32, %c0_i32_0 : i32, i32
  }
  func.func @transform_9(%arg0: i32) -> (i32, i32) {
    %c0_i32 = arith.constant 0 : i32
    %c0_i32_0 = arith.constant 0 : i32
    return %arg0, %c0_i32 : i32, i32
  }
}

</mosaic_0001>

<llo_original>
// kernel: qnet_forward.1
$region0: #{qnet_forward.1}
  #allocation0 [shape = 'u32[]', space=smem, size = 0x4, offset = 0x4, fixed_abs, tag = 'smem constant byte address 0x4 - core index']
  #allocation1 [shape = 'u32[72,128]{1,0:T(1,128)}', space=vmem, size = 0x9000, scoped, tag = 'internal scratch']
  %s0 = inlined_call_operand.vmem [shape: f32[8,13], index: 0, kind: input, shape index: {}]
  %s1 = inlined_call_operand.vmem [shape: f32[13,256], index: 1, kind: input, shape index: {}]
  %s2 = inlined_call_operand.vmem [shape: f32[1,256], index: 2, kind: input, shape index: {}]
  %s3 = inlined_call_operand.hbm [shape: f32[256,256], index: 3, kind: input, shape index: {}]
  %s4 = inlined_call_operand.vmem [shape: f32[1,256], index: 4, kind: input, shape index: {}]
  %s5 = inlined_call_operand.hbm [shape: f32[256,256], index: 5, kind: input, shape index: {}]
  %s6 = inlined_call_operand.vmem [shape: f32[1,256], index: 6, kind: input, shape index: {}]
  %s7 = inlined_call_operand.vmem [shape: f32[256,4], index: 7, kind: input, shape index: {}]
  %s8 = inlined_call_operand.vmem [shape: f32[1,4], index: 8, kind: input, shape index: {}]
  %s9 = inlined_call_operand.vmem [shape: f32[8,4], index: 9, kind: output, shape index: {}]
  %s10 = sld [smem:[#allocation0]]
  $region54: #{qnet_forward.1} parent=0
    _
  %s12 = ssub.s32 1, %s10
  %s13 = scalar_select 0, %s12, %s10
  $region1: #{qnet_forward.1} parent=0
    #allocation2 [shape = 'u8[262144]{0}', space=vmem, size = 0x40000, scoped, tag = 'input window, operand 3, single buffered']
    #allocation3 [shape = 's32[1]{0}', space=sflag, size = 0x4, scoped, tag = 'scoped memory for qnet_forward.1']
    #allocation4 [shape = 'u8[262144]{0}', space=vmem, size = 0x40000, scoped, tag = 'input window, operand 5, single buffered']
    #allocation5 [shape = 's32[1]{0}', space=sflag, size = 0x4, scoped, tag = 'scoped memory for qnet_forward.1']
    %14 = vsyncpa [#allocation3], 0
    %15 = vsyncpa [#allocation5], 0
    // Predicated region
    $region2: #{qnet_forward.1} parent=1 // pred_check
      _
    $region3: #{qnet_forward.1} parent=1 // pred_check_branch
      %17 = sbr.rel (0) target = $region5
    $region4: #{qnet_forward.1} parent=1 // pred_region
      _
    $region5: #{qnet_forward.1} parent=1 // pred_fallthru
      _
    // Predicated region
    $region6: #{qnet_forward.1} parent=1 // pred_check
      _
    $region7: #{qnet_forward.1} parent=1 // pred_check_branch
      %19 = sbr.rel (0) target = $region9
    $region8: #{qnet_forward.1} parent=1 // pred_region
      _
    $region9: #{qnet_forward.1} parent=1 // pred_fallthru
      _
    // Predicated region
    $region10: #{qnet_forward.1} parent=1 // pred_check
      _
    $region11: #{qnet_forward.1} parent=1 // pred_check_branch
      %21 = sbr.rel (0) target = $region13
    $region12: #{qnet_forward.1} parent=1 // pred_region
      _
    $region13: #{qnet_forward.1} parent=1 // pred_fallthru
      _
    // Predicated region
    $region14: #{qnet_forward.1} parent=1 // pred_check
      _
    $region15: #{qnet_forward.1} parent=1 // pred_check_branch
      %23 = sbr.rel (0) target = $region17
    $region16: #{qnet_forward.1} parent=1 // pred_region
      %25 = vsyncadd [#allocation3], 0
      %s26 = sshll.u32 %s3, 4
      %s27 = int_to_ptr.hbm [resolvable:$true] %s26
      %s28 = sshll.u32 [#allocation2], 4
      %s29 = int_to_ptr.vmem [resolvable:$true] %s28
      %34 = dma.hbm_to_vmem [thread:$0]  %s27, 8192, %s29, [#allocation3], 256, 256, 16
    $region17: #{qnet_forward.1} parent=1 // pred_fallthru
      _
    // Predicated region
    $region18: #{qnet_forward.1} parent=1 // pred_check
      _
    $region19: #{qnet_forward.1} parent=1 // pred_check_branch
      %36 = sbr.rel (0) target = $region21
    $region20: #{qnet_forward.1} parent=1 // pred_region
      _
    $region21: #{qnet_forward.1} parent=1 // pred_fallthru
      _
    // Predicated region
    $region22: #{qnet_forward.1} parent=1 // pred_check
      _
    $region23: #{qnet_forward.1} parent=1 // pred_check_branch
      %38 = sbr.rel (0) target = $region25
    $region24: #{qnet_forward.1} parent=1 // pred_region
      %40 = vsyncadd [#allocation5], 0
      %s41 = sshll.u32 %s5, 4
      %s42 = int_to_ptr.hbm [resolvable:$true] %s41
      %s43 = sshll.u32 [#allocation4], 4
      %s44 = int_to_ptr.vmem [resolvable:$true] %s43
      %49 = dma.hbm_to_vmem [thread:$0]  %s42, 8192, %s44, [#allocation5], 256, 256, 16
    $region25: #{qnet_forward.1} parent=1 // pred_fallthru
      _
    // Predicated region
    $region26: #{qnet_forward.1} parent=1 // pred_check
      _
    $region27: #{qnet_forward.1} parent=1 // pred_check_branch
      %51 = sbr.rel (0) target = $region29
    $region28: #{qnet_forward.1} parent=1 // pred_region
      _
    $region29: #{qnet_forward.1} parent=1 // pred_fallthru
      _
    // Predicated region
    $region30: #{qnet_forward.1} parent=1 // pred_check
      _
    $region31: #{qnet_forward.1} parent=1 // pred_check_branch
      %53 = sbr.rel (0) target = $region33
    $region32: #{qnet_forward.1} parent=1 // pred_region
      _
    $region33: #{qnet_forward.1} parent=1 // pred_fallthru
      _
    // Predicated region
    $region34: #{qnet_forward.1} parent=1 // pred_check
      _
    $region35: #{qnet_forward.1} parent=1 // pred_check_branch
      %55 = sbr.rel (0) target = $region37
    $region36: #{qnet_forward.1} parent=1 // pred_region
      _
    $region37: #{qnet_forward.1} parent=1 // pred_fallthru
      _
    // Predicated region
    $region38: #{qnet_forward.1} parent=1 // pred_check
      _
    $region39: #{qnet_forward.1} parent=1 // pred_check_branch
      %57 = sbr.rel (0) target = $region41
    $region40: #{qnet_forward.1} parent=1 // pred_region
      %59 = dma.done [#allocation3], 8192
    $region41: #{qnet_forward.1} parent=1 // pred_fallthru
      _
    // Predicated region
    $region42: #{qnet_forward.1} parent=1 // pred_check
      _
    $region43: #{qnet_forward.1} parent=1 // pred_check_branch
      %61 = sbr.rel (0) target = $region45
    $region44: #{qnet_forward.1} parent=1 // pred_region
      %63 = dma.done [#allocation5], 8192
    $region45: #{qnet_forward.1} parent=1 // pred_fallthru
      _
    %v64 = vld [vmem:[%s0] sm:$0xff]
    %v65 = vld [vmem:[%s1] sm:$0xff]
    %v66 = vld [vmem:[%s1 + $0x8] sm:$0xff]
    %v67 = vld [vmem:[%s1 + $0x10] sm:$0x1f]
    %v68 = vld [vmem:[%s1 + $0x18] sm:$0x1f]
    %v69 = vld [vmem:[%s2] sm:$0x3]
    %v71 = vperm.slane %v69, 0
    %v72 = vperm.slane %v69, 1
    %vm75 = vcmask 105472
    %v77 = vsel %vm75, %v64, 0
    %vm79 = vcmask 1044480
    %v81 = vsel %vm79, %v67, 0
    %v84 = vsel %vm79, %v68, 0
    %86 = vmatpush.msra.mxu0 0.0
    %87 = vmatpush.msra.mxu0 0.0
    %88 = vmatpush.msra.mxu0 0.0
    %89 = vmatpush.msra.mxu0 0.0
    %90 = vmatpush.msra.mxu0 0.0
    %91 = vmatpush.msra.mxu0 0.0
    %92 = vmatpush.msra.mxu0 0.0
    %93 = vmatpush.msra.mxu0 0.0
    %94 = vmatpush.msra.mxu0 0.0
    %95 = vmatpush.msra.mxu0 0.0
    %96 = vmatpush.msra.mxu0 0.0
    %97 = vmatpush.msra.mxu0 0.0
    %98 = vmatpush.msra.mxu0 0.0
    %99 = vmatpush.msra.mxu0 0.0
    %100 = vmatpush.msra.mxu0 %v81
    %101 = vmatpush.msra.mxu0 %v65
    %102 = vmatmul.f32.gmra.mxu0 %v77
    %v103 = vpop.f32.mrf.mxu0
    %v104 = vadd.f32 %v71, %v103
    %105 = vdwg.mxu0
    %106 = vmatpush.msra.mxu0 0.0
    %107 = vmatpush.msra.mxu0 0.0
    %108 = vmatpush.msra.mxu0 0.0
    %109 = vmatpush.msra.mxu0 0.0
    %110 = vmatpush.msra.mxu0 0.0
    %111 = vmatpush.msra.mxu0 0.0
    %112 = vmatpush.msra.mxu0 0.0
    %113 = vmatpush.msra.mxu0 0.0
    %114 = vmatpush.msra.mxu0 0.0
    %115 = vmatpush.msra.mxu0 0.0
    %116 = vmatpush.msra.mxu0 0.0
    %117 = vmatpush.msra.mxu0 0.0
    %118 = vmatpush.msra.mxu0 0.0
    %119 = vmatpush.msra.mxu0 0.0
    %120 = vmatpush.msra.mxu0 %v84
    %121 = vmatpush.msra.mxu0 %v66
    %122 = vmatmul.f32.gmra.mxu0 %v77
    %v123 = vpop.f32.mrf.mxu0
    %v124 = vadd.f32 %v72, %v123
    %125 = vdwg.mxu0
    %v126 = vmax.f32 %v104, 0.0
    %v127 = vmax.f32 %v124, 0.0
    %v128 = vld [vmem:[#allocation2] sm:$0xff]
    %v129 = vld [vmem:[#allocation2 + $0x8] sm:$0xff]
    %v130 = vld [vmem:[#allocation2 + $0x10] sm:$0xff]
    %v131 = vld [vmem:[#allocation2 + $0x18] sm:$0xff]
    %v132 = vld [vmem:[#allocation2 + $0x20] sm:$0xff]
    %v133 = vld [vmem:[#allocation2 + $0x28] sm:$0xff]
    %v134 = vld [vmem:[#allocation2 + $0x30] sm:$0xff]
    %v135 = vld [vmem:[#allocation2 + $0x38] sm:$0xff]
    %v136 = vld [vmem:[#allocation2 + $0x40] sm:$0xff]
    %v137 = vld [vmem:[#allocation2 + $0x48] sm:$0xff]
    %v138 = vld [vmem:[#allocation2 + $0x50] sm:$0xff]
    %v139 = vld [vmem:[#allocation2 + $0x58] sm:$0xff]
    %v140 = vld [vmem:[#allocation2 + $0x60] sm:$0xff]
    %v141 = vld [vmem:[#allocation2 + $0x68] sm:$0xff]
    %v142 = vld [vmem:[#allocation2 + $0x70] sm:$0xff]
    %v143 = vld [vmem:[#allocation2 + $0x78] sm:$0xff]
    %v144 = vld [vmem:[#allocation2 + $0x80] sm:$0xff]
    %v145 = vld [vmem:[#allocation2 + $0x88] sm:$0xff]
    %v146 = vld [vmem:[#allocation2 + $0x90] sm:$0xff]
    %v147 = vld [vmem:[#allocation2 + $0x98] sm:$0xff]
    %v148 = vld [vmem:[#allocation2 + $0xa0] sm:$0xff]
    %v149 = vld [vmem:[#allocation2 + $0xa8] sm:$0xff]
    %v150 = vld [vmem:[#allocation2 + $0xb0] sm:$0xff]
    %v151 = vld [vmem:[#allocation2 + $0xb8] sm:$0xff]
    %v152 = vld [vmem:[#allocation2 + $0xc0] sm:$0xff]
    %v153 = vld [vmem:[#allocation2 + $0xc8] sm:$0xff]
    %v154 = vld [vmem:[#allocation2 + $0xd0] sm:$0xff]
    %v155 = vld [vmem:[#allocation2 + $0xd8] sm:$0xff]
    %v156 = vld [vmem:[#allocation2 + $0xe0] sm:$0xff]
    %v157 = vld [vmem:[#allocation2 + $0xe8] sm:$0xff]
    %v158 = vld [vmem:[#allocation2 + $0xf0] sm:$0xff]
    %v159 = vld [vmem:[#allocation2 + $0xf8] sm:$0xff]
    %v160 = vld [vmem:[#allocation2 + $0x100] sm:$0xff]
    %v161 = vld [vmem:[#allocation2 + $0x108] sm:$0xff]
    %v162 = vld [vmem:[#allocation2 + $0x110] sm:$0xff]
    %v163 = vld [vmem:[#allocation2 + $0x118] sm:$0xff]
    %v164 = vld [vmem:[#allocation2 + $0x120] sm:$0xff]
    %v165 = vld [vmem:[#allocation2 + $0x128] sm:$0xff]
    %v166 = vld [vmem:[#allocation2 + $0x130] sm:$0xff]
    %v167 = vld [vmem:[#allocation2 + $0x138] sm:$0xff]
    %v168 = vld [vmem:[#allocation2 + $0x140] sm:$0xff]
    %v169 = vld [vmem:[#allocation2 + $0x148] sm:$0xff]
    %v170 = vld [vmem:[#allocation2 + $0x150] sm:$0xff]
    %v171 = vld [vmem:[#allocation2 + $0x158] sm:$0xff]
    %v172 = vld [vmem:[#allocation2 + $0x160] sm:$0xff]
    %v173 = vld [vmem:[#allocation2 + $0x168] sm:$0xff]
    %v174 = vld [vmem:[#allocation2 + $0x170] sm:$0xff]
    %v175 = vld [vmem:[#allocation2 + $0x178] sm:$0xff]
    %v176 = vld [vmem:[#allocation2 + $0x180] sm:$0xff]
    %v177 = vld [vmem:[#allocation2 + $0x188] sm:$0xff]
    %v178 = vld [vmem:[#allocation2 + $0x190] sm:$0xff]
    %v179 = vld [vmem:[#allocation2 + $0x198] sm:$0xff]
    %v180 = vld [vmem:[#allocation2 + $0x1a0] sm:$0xff]
    %v181 = vld [vmem:[#allocation2 + $0x1a8] sm:$0xff]
    %v182 = vld [vmem:[#allocation2 + $0x1b0] sm:$0xff]
    %v183 = vld [vmem:[#allocation2 + $0x1b8] sm:$0xff]
    %v184 = vld [vmem:[#allocation2 + $0x1c0] sm:$0xff]
    %v185 = vld [vmem:[#allocation2 + $0x1c8] sm:$0xff]
    %v186 = vld [vmem:[#allocation2 + $0x1d0] sm:$0xff]
    %v187 = vld [vmem:[#allocation2 + $0x1d8] sm:$0xff]
    %v188 = vld [vmem:[#allocation2 + $0x1e0] sm:$0xff]
    %v189 = vld [vmem:[#allocation2 + $0x1e8] sm:$0xff]
    %v190 = vld [vmem:[#allocation2 + $0x1f0] sm:$0xff]
    %v191 = vld [vmem:[#allocation2 + $0x1f8] sm:$0xff]
    %v192 = vld [vmem:[%s4] sm:$0x3]
    %v194 = vperm.slane %v192, 0
    %v195 = vperm.slane %v192, 1
    %198 = vmatpush.msra.mxu0 %v158
    %199 = vmatpush.msra.mxu0 %v156
    %200 = vmatpush.msra.mxu0 %v154
    %201 = vmatpush.msra.mxu0 %v152
    %202 = vmatpush.msra.mxu0 %v150
    %203 = vmatpush.msra.mxu0 %v148
    %204 = vmatpush.msra.mxu0 %v146
    %205 = vmatpush.msra.mxu0 %v144
    %206 = vmatpush.msra.mxu0 %v142
    %207 = vmatpush.msra.mxu0 %v140
    %208 = vmatpush.msra.mxu0 %v138
    %209 = vmatpush.msra.mxu0 %v136
    %210 = vmatpush.msra.mxu0 %v134
    %211 = vmatpush.msra.mxu0 %v132
    %212 = vmatpush.msra.mxu0 %v130
    %213 = vmatpush.msra.mxu0 %v128
    %214 = vmatmul.f32.gmra.mxu0 %v126
    %v215 = vpop.f32.mrf.mxu0
    %v216 = vadd.f32 %v194, %v215
    %217 = vdwg.mxu0
    %218 = vmatpush.msra.mxu0 %v190
    %219 = vmatpush.msra.mxu0 %v188
    %220 = vmatpush.msra.mxu0 %v186
    %221 = vmatpush.msra.mxu0 %v184
    %222 = vmatpush.msra.mxu0 %v182
    %223 = vmatpush.msra.mxu0 %v180
    %224 = vmatpush.msra.mxu0 %v178
    %225 = vmatpush.msra.mxu0 %v176
    %226 = vmatpush.msra.mxu0 %v174
    %227 = vmatpush.msra.mxu0 %v172
    %228 = vmatpush.msra.mxu0 %v170
    %229 = vmatpush.msra.mxu0 %v168
    %230 = vmatpush.msra.mxu0 %v166
    %231 = vmatpush.msra.mxu0 %v164
    %232 = vmatpush.msra.mxu0 %v162
    %233 = vmatpush.msra.mxu0 %v160
    %234 = vmatmul.f32.gmra.mxu0 %v127
    %v235 = vpop.f32.mrf.mxu0
    %v236 = vadd.f32 %v216, %v235
    %237 = vdwg.mxu0
    %238 = vmatpush.msra.mxu0 %v159
    %239 = vmatpush.msra.mxu0 %v157
    %240 = vmatpush.msra.mxu0 %v155
    %241 = vmatpush.msra.mxu0 %v153
    %242 = vmatpush.msra.mxu0 %v151
    %243 = vmatpush.msra.mxu0 %v149
    %244 = vmatpush.msra.mxu0 %v147
    %245 = vmatpush.msra.mxu0 %v145
    %246 = vmatpush.msra.mxu0 %v143
    %247 = vmatpush.msra.mxu0 %v141
    %248 = vmatpush.msra.mxu0 %v139
    %249 = vmatpush.msra.mxu0 %v137
    %250 = vmatpush.msra.mxu0 %v135
    %251 = vmatpush.msra.mxu0 %v133
    %252 = vmatpush.msra.mxu0 %v131
    %253 = vmatpush.msra.mxu0 %v129
    %254 = vmatmul.f32.gmra.mxu0 %v126
    %v255 = vpop.f32.mrf.mxu0
    %v256 = vadd.f32 %v195, %v255
    %257 = vdwg.mxu0
    %258 = vmatpush.msra.mxu0 %v191
    %259 = vmatpush.msra.mxu0 %v189
    %260 = vmatpush.msra.mxu0 %v187
    %261 = vmatpush.msra.mxu0 %v185
    %262 = vmatpush.msra.mxu0 %v183
    %263 = vmatpush.msra.mxu0 %v181
    %264 = vmatpush.msra.mxu0 %v179
    %265 = vmatpush.msra.mxu0 %v177
    %266 = vmatpush.msra.mxu0 %v175
    %267 = vmatpush.msra.mxu0 %v173
    %268 = vmatpush.msra.mxu0 %v171
    %269 = vmatpush.msra.mxu0 %v169
    %270 = vmatpush.msra.mxu0 %v167
    %271 = vmatpush.msra.mxu0 %v165
    %272 = vmatpush.msra.mxu0 %v163
    %273 = vmatpush.msra.mxu0 %v161
    %274 = vmatmul.f32.gmra.mxu0 %v127
    %v275 = vpop.f32.mrf.mxu0
    %v276 = vadd.f32 %v256, %v275
    %277 = vdwg.mxu0
    %v278 = vmax.f32 %v236, 0.0
    %v279 = vmax.f32 %v276, 0.0
    %v280 = vld [vmem:[#allocation4] sm:$0xff]
    %v281 = vld [vmem:[#allocation4 + $0x8] sm:$0xff]
    %v282 = vld [vmem:[#allocation4 + $0x10] sm:$0xff]
    %v283 = vld [vmem:[#allocation4 + $0x18] sm:$0xff]
    %v284 = vld [vmem:[#allocation4 + $0x20] sm:$0xff]
    %v285 = vld [vmem:[#allocation4 + $0x28] sm:$0xff]
    %v286 = vld [vmem:[#allocation4 + $0x30] sm:$0xff]
    %v287 = vld [vmem:[#allocation4 + $0x38] sm:$0xff]
    %v288 = vld [vmem:[#allocation4 + $0x40] sm:$0xff]
    %v289 = vld [vmem:[#allocation4 + $0x48] sm:$0xff]
    %v290 = vld [vmem:[#allocation4 + $0x50] sm:$0xff]
    %v291 = vld [vmem:[#allocation4 + $0x58] sm:$0xff]
    %v292 = vld [vmem:[#allocation4 + $0x60] sm:$0xff]
    %v293 = vld [vmem:[#allocation4 + $0x68] sm:$0xff]
    %v294 = vld [vmem:[#allocation4 + $0x70] sm:$0xff]
    %v295 = vld [vmem:[#allocation4 + $0x78] sm:$0xff]
    %v296 = vld [vmem:[#allocation4 + $0x80] sm:$0xff]
    %v297 = vld [vmem:[#allocation4 + $0x88] sm:$0xff]
    %v298 = vld [vmem:[#allocation4 + $0x90] sm:$0xff]
    %v299 = vld [vmem:[#allocation4 + $0x98] sm:$0xff]
    %v300 = vld [vmem:[#allocation4 + $0xa0] sm:$0xff]
    %v301 = vld [vmem:[#allocation4 + $0xa8] sm:$0xff]
    %v302 = vld [vmem:[#allocation4 + $0xb0] sm:$0xff]
    %v303 = vld [vmem:[#allocation4 + $0xb8] sm:$0xff]
    %v304 = vld [vmem:[#allocation4 + $0xc0] sm:$0xff]
    %v305 = vld [vmem:[#allocation4 + $0xc8] sm:$0xff]
    %v306 = vld [vmem:[#allocation4 + $0xd0] sm:$0xff]
    %v307 = vld [vmem:[#allocation4 + $0xd8] sm:$0xff]
    %v308 = vld [vmem:[#allocation4 + $0xe0] sm:$0xff]
    %v309 = vld [vmem:[#allocation4 + $0xe8] sm:$0xff]
    %v310 = vld [vmem:[#allocation4 + $0xf0] sm:$0xff]
    %v311 = vld [vmem:[#allocation4 + $0xf8] sm:$0xff]
    %v312 = vld [vmem:[#allocation4 + $0x100] sm:$0xff]
    %v313 = vld [vmem:[#allocation4 + $0x108] sm:$0xff]
    %v314 = vld [vmem:[#allocation4 + $0x110] sm:$0xff]
    %v315 = vld [vmem:[#allocation4 + $0x118] sm:$0xff]
    %v316 = vld [vmem:[#allocation4 + $0x120] sm:$0xff]
    %v317 = vld [vmem:[#allocation4 + $0x128] sm:$0xff]
    %v318 = vld [vmem:[#allocation4 + $0x130] sm:$0xff]
    %v319 = vld [vmem:[#allocation4 + $0x138] sm:$0xff]
    %v320 = vld [vmem:[#allocation4 + $0x140] sm:$0xff]
    %v321 = vld [vmem:[#allocation4 + $0x148] sm:$0xff]
    %v322 = vld [vmem:[#allocation4 + $0x150] sm:$0xff]
    %v323 = vld [vmem:[#allocation4 + $0x158] sm:$0xff]
    %v324 = vld [vmem:[#allocation4 + $0x160] sm:$0xff]
    %v325 = vld [vmem:[#allocation4 + $0x168] sm:$0xff]
    %v326 = vld [vmem:[#allocation4 + $0x170] sm:$0xff]
    %v327 = vld [vmem:[#allocation4 + $0x178] sm:$0xff]
    %v328 = vld [vmem:[#allocation4 + $0x180] sm:$0xff]
    %v329 = vld [vmem:[#allocation4 + $0x188] sm:$0xff]
    %v330 = vld [vmem:[#allocation4 + $0x190] sm:$0xff]
    %v331 = vld [vmem:[#allocation4 + $0x198] sm:$0xff]
    %v332 = vld [vmem:[#allocation4 + $0x1a0] sm:$0xff]
    %v333 = vld [vmem:[#allocation4 + $0x1a8] sm:$0xff]
    %v334 = vld [vmem:[#allocation4 + $0x1b0] sm:$0xff]
    %v335 = vld [vmem:[#allocation4 + $0x1b8] sm:$0xff]
    %v336 = vld [vmem:[#allocation4 + $0x1c0] sm:$0xff]
    %v337 = vld [vmem:[#allocation4 + $0x1c8] sm:$0xff]
    %v338 = vld [vmem:[#allocation4 + $0x1d0] sm:$0xff]
    %v339 = vld [vmem:[#allocation4 + $0x1d8] sm:$0xff]
    %v340 = vld [vmem:[#allocation4 + $0x1e0] sm:$0xff]
    %v341 = vld [vmem:[#allocation4 + $0x1e8] sm:$0xff]
    %v342 = vld [vmem:[#allocation4 + $0x1f0] sm:$0xff]
    %v343 = vld [vmem:[#allocation4 + $0x1f8] sm:$0xff]
    %v344 = vld [vmem:[%s6] sm:$0x3]
    %v346 = vperm.slane %v344, 0
    %v347 = vperm.slane %v344, 1
    %350 = vmatpush.msra.mxu0 %v310
    %351 = vmatpush.msra.mxu0 %v308
    %352 = vmatpush.msra.mxu0 %v306
    %353 = vmatpush.msra.mxu0 %v304
    %354 = vmatpush.msra.mxu0 %v302
    %355 = vmatpush.msra.mxu0 %v300
    %356 = vmatpush.msra.mxu0 %v298
    %357 = vmatpush.msra.mxu0 %v296
    %358 = vmatpush.msra.mxu0 %v294
    %359 = vmatpush.msra.mxu0 %v292
    %360 = vmatpush.msra.mxu0 %v290
    %361 = vmatpush.msra.mxu0 %v288
    %362 = vmatpush.msra.mxu0 %v286
    %363 = vmatpush.msra.mxu0 %v284
    %364 = vmatpush.msra.mxu0 %v282
    %365 = vmatpush.msra.mxu0 %v280
    %366 = vmatmul.f32.gmra.mxu0 %v278
    %v367 = vpop.f32.mrf.mxu0
    %v368 = vadd.f32 %v346, %v367
    %369 = vdwg.mxu0
    %370 = vmatpush.msra.mxu0 %v342
    %371 = vmatpush.msra.mxu0 %v340
    %372 = vmatpush.msra.mxu0 %v338
    %373 = vmatpush.msra.mxu0 %v336
    %374 = vmatpush.msra.mxu0 %v334
    %375 = vmatpush.msra.mxu0 %v332
    %376 = vmatpush.msra.mxu0 %v330
    %377 = vmatpush.msra.mxu0 %v328
    %378 = vmatpush.msra.mxu0 %v326
    %379 = vmatpush.msra.mxu0 %v324
    %380 = vmatpush.msra.mxu0 %v322
    %381 = vmatpush.msra.mxu0 %v320
    %382 = vmatpush.msra.mxu0 %v318
    %383 = vmatpush.msra.mxu0 %v316
    %384 = vmatpush.msra.mxu0 %v314
    %385 = vmatpush.msra.mxu0 %v312
    %386 = vmatmul.f32.gmra.mxu0 %v279
    %v387 = vpop.f32.mrf.mxu0
    %v388 = vadd.f32 %v368, %v387
    %389 = vdwg.mxu0
    %390 = vmatpush.msra.mxu0 %v311
    %391 = vmatpush.msra.mxu0 %v309
    %392 = vmatpush.msra.mxu0 %v307
    %393 = vmatpush.msra.mxu0 %v305
    %394 = vmatpush.msra.mxu0 %v303
    %395 = vmatpush.msra.mxu0 %v301
    %396 = vmatpush.msra.mxu0 %v299
    %397 = vmatpush.msra.mxu0 %v297
    %398 = vmatpush.msra.mxu0 %v295
    %399 = vmatpush.msra.mxu0 %v293
    %400 = vmatpush.msra.mxu0 %v291
    %401 = vmatpush.msra.mxu0 %v289
    %402 = vmatpush.msra.mxu0 %v287
    %403 = vmatpush.msra.mxu0 %v285
    %404 = vmatpush.msra.mxu0 %v283
    %405 = vmatpush.msra.mxu0 %v281
    %406 = vmatmul.f32.gmra.mxu0 %v278
    %v407 = vpop.f32.mrf.mxu0
    %v408 = vadd.f32 %v347, %v407
    %409 = vdwg.mxu0
    %410 = vmatpush.msra.mxu0 %v343
    %411 = vmatpush.msra.mxu0 %v341
    %412 = vmatpush.msra.mxu0 %v339
    %413 = vmatpush.msra.mxu0 %v337
    %414 = vmatpush.msra.mxu0 %v335
    %415 = vmatpush.msra.mxu0 %v333
    %416 = vmatpush.msra.mxu0 %v331
    %417 = vmatpush.msra.mxu0 %v329
    %418 = vmatpush.msra.mxu0 %v327
    %419 = vmatpush.msra.mxu0 %v325
    %420 = vmatpush.msra.mxu0 %v323
    %421 = vmatpush.msra.mxu0 %v321
    %422 = vmatpush.msra.mxu0 %v319
    %423 = vmatpush.msra.mxu0 %v317
    %424 = vmatpush.msra.mxu0 %v315
    %425 = vmatpush.msra.mxu0 %v313
    %426 = vmatmul.f32.gmra.mxu0 %v279
    %v427 = vpop.f32.mrf.mxu0
    %v428 = vadd.f32 %v408, %v427
    %429 = vdwg.mxu0
    %v430 = vmax.f32 %v388, 0.0
    %v431 = vmax.f32 %v428, 0.0
    %v432 = vld [vmem:[%s7] sm:$0xff]
    %v433 = vld [vmem:[%s7 + $0x8] sm:$0xff]
    %v434 = vld [vmem:[%s7 + $0x10] sm:$0xff]
    %v435 = vld [vmem:[%s7 + $0x18] sm:$0xff]
    %v436 = vld [vmem:[%s7 + $0x20] sm:$0xff]
    %v437 = vld [vmem:[%s7 + $0x28] sm:$0xff]
    %v438 = vld [vmem:[%s7 + $0x30] sm:$0xff]
    %v439 = vld [vmem:[%s7 + $0x38] sm:$0xff]
    %v440 = vld [vmem:[%s7 + $0x40] sm:$0xff]
    %v441 = vld [vmem:[%s7 + $0x48] sm:$0xff]
    %v442 = vld [vmem:[%s7 + $0x50] sm:$0xff]
    %v443 = vld [vmem:[%s7 + $0x58] sm:$0xff]
    %v444 = vld [vmem:[%s7 + $0x60] sm:$0xff]
    %v445 = vld [vmem:[%s7 + $0x68] sm:$0xff]
    %v446 = vld [vmem:[%s7 + $0x70] sm:$0xff]
    %v447 = vld [vmem:[%s7 + $0x78] sm:$0xff]
    %v448 = vld [vmem:[%s7 + $0x80] sm:$0xff]
    %v449 = vld [vmem:[%s7 + $0x88] sm:$0xff]
    %v450 = vld [vmem:[%s7 + $0x90] sm:$0xff]
    %v451 = vld [vmem:[%s7 + $0x98] sm:$0xff]
    %v452 = vld [vmem:[%s7 + $0xa0] sm:$0xff]
    %v453 = vld [vmem:[%s7 + $0xa8] sm:$0xff]
    %v454 = vld [vmem:[%s7 + $0xb0] sm:$0xff]
    %v455 = vld [vmem:[%s7 + $0xb8] sm:$0xff]
    %v456 = vld [vmem:[%s7 + $0xc0] sm:$0xff]
    %v457 = vld [vmem:[%s7 + $0xc8] sm:$0xff]
    %v458 = vld [vmem:[%s7 + $0xd0] sm:$0xff]
    %v459 = vld [vmem:[%s7 + $0xd8] sm:$0xff]
    %v460 = vld [vmem:[%s7 + $0xe0] sm:$0xff]
    %v461 = vld [vmem:[%s7 + $0xe8] sm:$0xff]
    %v462 = vld [vmem:[%s7 + $0xf0] sm:$0xff]
    %v463 = vld [vmem:[%s7 + $0xf8] sm:$0xff]
    %v464 = vld [vmem:[%s8] sm:$0x1]
    %v466 = vperm.slane %v464, 0
    %468 = vmatpush.msra.mxu0 %v447
    %469 = vmatpush.msra.mxu0 %v446
    %470 = vmatpush.msra.mxu0 %v445
    %471 = vmatpush.msra.mxu0 %v444
    %472 = vmatpush.msra.mxu0 %v443
    %473 = vmatpush.msra.mxu0 %v442
    %474 = vmatpush.msra.mxu0 %v441
    %475 = vmatpush.msra.mxu0 %v440
    %476 = vmatpush.msra.mxu0 %v439
    %477 = vmatpush.msra.mxu0 %v438
    %478 = vmatpush.msra.mxu0 %v437
    %479 = vmatpush.msra.mxu0 %v436
    %480 = vmatpush.msra.mxu0 %v435
    %481 = vmatpush.msra.mxu0 %v434
    %482 = vmatpush.msra.mxu0 %v433
    %483 = vmatpush.msra.mxu0 %v432
    %484 = vmatmul.f32.gmra.mxu0 %v430
    %v485 = vpop.f32.mrf.mxu0
    %v486 = vadd.f32 %v466, %v485
    %487 = vdwg.mxu0
    %488 = vmatpush.msra.mxu0 %v463
    %489 = vmatpush.msra.mxu0 %v462
    %490 = vmatpush.msra.mxu0 %v461
    %491 = vmatpush.msra.mxu0 %v460
    %492 = vmatpush.msra.mxu0 %v459
    %493 = vmatpush.msra.mxu0 %v458
    %494 = vmatpush.msra.mxu0 %v457
    %495 = vmatpush.msra.mxu0 %v456
    %496 = vmatpush.msra.mxu0 %v455
    %497 = vmatpush.msra.mxu0 %v454
    %498 = vmatpush.msra.mxu0 %v453
    %499 = vmatpush.msra.mxu0 %v452
    %500 = vmatpush.msra.mxu0 %v451
    %501 = vmatpush.msra.mxu0 %v450
    %502 = vmatpush.msra.mxu0 %v449
    %503 = vmatpush.msra.mxu0 %v448
    %504 = vmatmul.f32.gmra.mxu0 %v431
    %v505 = vpop.f32.mrf.mxu0
    %v506 = vadd.f32 %v486, %v505
    %507 = vdwg.mxu0
    %vm508 = vcmask 31744
    %509 = vst.msk [vmem:[%s9] sm:$0xff] %vm508, %v506
    // Predicated region
    $region46: #{qnet_forward.1} parent=1 // pred_check
      _
    $region47: #{qnet_forward.1} parent=1 // pred_check_branch
      %511 = sbr.rel (0) target = $region49
    $region48: #{qnet_forward.1} parent=1 // pred_region
      _
    $region49: #{qnet_forward.1} parent=1 // pred_fallthru
      _
    // Predicated region
    $region50: #{qnet_forward.1} parent=1 // pred_check
      _
    $region51: #{qnet_forward.1} parent=1 // pred_check_branch
      %513 = sbr.rel (0) target = $region53
    $region52: #{qnet_forward.1} parent=1 // pred_region
      _
    $region53: #{qnet_forward.1} parent=1 // pred_fallthru
      _
    %514 = vsyncpa [#allocation3], 1
    %515 = vsyncpa [#allocation5], 1

</llo_original>
